<compile_context>
chip_gen: v5e
topology: v5e:2x2
jax: 0.10.0
libtpu: 0.0.40
codegen_flags: <defaults>
</compile_context>

<pallas_src>
import functools
import math

import jax
import jax.numpy as jnp
from jax.experimental import pallas as pl
from jax.experimental.pallas import tpu as pltpu


# ----------------------------------------------------------------------------
# helpers
# ----------------------------------------------------------------------------
def _round_up(x, m):
    return (x + m - 1) // m * m


def _pick_tile(n, max_t):
    """Largest divisor of n that is <= max_t and TPU-tiling friendly."""
    for align in (128, 8):
        best = None
        t = align
        while t <= min(n, max_t):
            if n % t == 0:
                best = t
            t += align
        if best is not None:
            return best
    return n


def _layernorm(x, gamma, beta, eps):
    mu = jnp.mean(x, axis=-1, keepdims=True)
    var = jnp.mean((x - mu) ** 2, axis=-1, keepdims=True)
    return (x - mu) * jax.lax.rsqrt(var + eps) * gamma + beta


def _rotate_half_matrix(hd):
    """R such that t @ R == concat([-t[..., hd//2:], t[..., :hd//2]], -1)."""
    half = hd // 2
    eye = jnp.eye(half, dtype=jnp.float32)
    z = jnp.zeros((half, half), jnp.float32)
    top = jnp.concatenate([z, eye], axis=1)     # rows i <  half -> +t[i] at col i+half
    bot = jnp.concatenate([-eye, z], axis=1)    # rows i >= half -> -t[i] at col i-half
    return jnp.concatenate([top, bot], axis=0)


# ----------------------------------------------------------------------------
# Pallas kernels
# ----------------------------------------------------------------------------
def _matmul_kernel(x_ref, w_ref, o_ref, acc_ref):
    @pl.when(pl.program_id(2) == 0)
    def _():
        acc_ref[...] = jnp.zeros_like(acc_ref)

    acc_ref[...] += jnp.dot(x_ref[...], w_ref[...], preferred_element_type=jnp.float32)

    @pl.when(pl.program_id(2) == pl.num_programs(2) - 1)
    def _():
        o_ref[...] = acc_ref[...].astype(o_ref.dtype)


def _up_kernel(h_ref, gamma_ref, beta_ref,
               wq_ref, wk_ref, wv_ref, wg_ref, wu_ref,
               rot_ref, cos_ref, sin_ref,
               q_ref, k_ref, v_ref, mlp_ref, *, eps, scale):
    """ReZeroIO.enter (LayerNorm) + fused up-projection + RoPE(q,k) + SiLU GLU."""
    x = h_ref[0]                                              # (ts, H) f32
    xn = _layernorm(x, gamma_ref[...], beta_ref[...], eps)
    xb = xn.astype(jnp.bfloat16)                              # bf16 MXU operand

    def proj(w_ref_):
        return jnp.dot(xb, w_ref_[...], preferred_element_type=jnp.float32)

    rot = rot_ref[...]                                        # (qkv, qkv) bf16, +/-1/0
    cos = cos_ref[...]                                        # (ts, qkv) f32 (per-head tiled)
    sin = sin_ref[...]

    def rope(t):                                              # (ts, qkv) f32
        t_rot = jnp.dot(t.astype(jnp.bfloat16), rot, preferred_element_type=jnp.float32)
        return t * cos + t_rot * sin

    q_ref[0] = (rope(proj(wq_ref)) * scale).astype(jnp.bfloat16)   # pre-scaled q
    k_ref[0] = rope(proj(wk_ref)).astype(jnp.bfloat16)
    v_ref[0] = proj(wv_ref).astype(jnp.bfloat16)
    gate = proj(wg_ref)
    val = proj(wu_ref)
    mlp_ref[0] = (jax.nn.silu(gate) * val).astype(jnp.bfloat16)    # GLU (SiLU)


def _flash_attn_kernel(q_ref, k_ref, v_ref, valid_ref, kreg_ref, vreg_ref,
                       o_ref, m_sc, l_sc, acc_sc):
    """Online-softmax attention; q/k arrive already roped & scaled (bf16)."""
    ki = pl.program_id(2)

    @pl.when(ki == 0)
    def _():
        m_sc[...] = jnp.full(m_sc.shape, -1e30, jnp.float32)
        l_sc[...] = jnp.zeros(l_sc.shape, jnp.float32)
        acc_sc[...] = jnp.zeros(acc_sc.shape, jnp.float32)

    qb = q_ref[0]                                             # (tq, hd) bf16
    kb = k_ref[0]                                             # (tk, hd) bf16
    s = jax.lax.dot_general(qb, kb, (((1,), (1,)), ((), ())),
                            preferred_element_type=jnp.float32)   # (tq, tk)

    m_prev = m_sc[...]
    m_new = jnp.maximum(m_prev, jnp.max(s, axis=-1, keepdims=True))
    # Explicitly zero masked keys (0/1 validity row) -- exact, no -inf/-1e30 bias.
    p = jnp.exp(s - m_new) * valid_ref[0]
    alpha = jnp.exp(m_prev - m_new)
    l_sc[...] = alpha * l_sc[...] + jnp.sum(p, axis=-1, keepdims=True)
    acc_sc[...] = alpha * acc_sc[...] + jnp.dot(
        p.astype(jnp.bfloat16), v_ref[0], preferred_element_type=jnp.float32)
    m_sc[...] = m_new

    @pl.when(ki == pl.num_programs(2) - 1)
    def _():
        # Learned register K/V token: one extra never-masked, un-roped key column,
        # handled as a final online-softmax step (no K/V concatenation needed).
        kreg = kreg_ref[0]                                    # (1, hd) bf16
        vreg = vreg_ref[0]                                    # (1, hd) f32
        s_reg = jax.lax.dot_general(qb, kreg, (((1,), (1,)), ((), ())),
                                    preferred_element_type=jnp.float32)  # (tq, 1)
        m_old = m_sc[...]
        m_fin = jnp.maximum(m_old, s_reg)
        a = jnp.exp(m_old - m_fin)
        p_reg = jnp.exp(s_reg - m_fin)
        l_fin = a * l_sc[...] + p_reg
        acc_fin = a * acc_sc[...] + p_reg * vreg
        o_ref[0] = (acc_fin * pl.reciprocal(l_fin, approx=True)).astype(o_ref.dtype)


def _down_kernel(h_ref, ctx_ref, mlp_ref, wda_ref, wdm_ref, filt_ref, o_ref):
    # FusedLinear down (two lane-aligned bf16 matmuls) + ReZeroIO.exit.
    dn = (jnp.dot(ctx_ref[0], wda_ref[...], preferred_element_type=jnp.float32) +
          jnp.dot(mlp_ref[0], wdm_ref[...], preferred_element_type=jnp.float32))
    o_ref[0] = h_ref[0] + filt_ref[...] * dn


def _lm_lse_kernel(x_ref, gamma_ref, beta_ref, w_ref, lse_ref, m_sc, l_sc, *, eps):
    """Streaming logsumexp over vocab blocks (flash-style)."""
    vb = pl.program_id(1)

    @pl.when(vb == 0)
    def _():
        m_sc[...] = jnp.full(m_sc.shape, -1e30, jnp.float32)
        l_sc[...] = jnp.zeros(l_sc.shape, jnp.float32)

    xn = _layernorm(x_ref[...], gamma_ref[...], beta_ref[...], eps)
    logits = jnp.dot(xn.astype(jnp.bfloat16), w_ref[...],
                     preferred_element_type=jnp.float32)
    m_prev = m_sc[...]
    m_new = jnp.maximum(m_prev, jnp.max(logits, axis=-1, keepdims=True))
    l_sc[...] = (jnp.exp(m_prev - m_new) * l_sc[...]
                 + jnp.sum(jnp.exp(logits - m_new), axis=-1, keepdims=True))
    m_sc[...] = m_new

    @pl.when(vb == pl.num_programs(1) - 1)
    def _():
        lse_ref[...] = m_sc[...] + jnp.log(l_sc[...])


def _lm_norm_kernel(x_ref, gamma_ref, beta_ref, w_ref, lse_ref, o_ref, *, eps):
    """Recompute the logits block and subtract the precomputed logsumexp."""
    xn = _layernorm(x_ref[...], gamma_ref[...], beta_ref[...], eps)
    logits = jnp.dot(xn.astype(jnp.bfloat16), w_ref[...],
                     preferred_element_type=jnp.float32)
    o_ref[...] = logits - lse_ref[...]


# ----------------------------------------------------------------------------
# pallas_call wrappers
# ----------------------------------------------------------------------------
def pallas_matmul(x, w, out_dtype=jnp.float32, tm=256, tn=256, tk=512):
    """Tiled (tm, tn, tk) matmul, bf16 MXU operands, f32 VMEM accumulator."""
    M, K = x.shape
    _, N = w.shape
    tm = min(tm, _round_up(M, 8))
    tn = N if N <= tn else tn
    tk = K if K <= tk else tk
    Mp, Np, Kp = _round_up(M, tm), _round_up(N, tn), _round_up(K, tk)
    xp = jnp.pad(x, ((0, Mp - M), (0, Kp - K))) if (Mp, Kp) != (M, K) else x
    wp = jnp.pad(w, ((0, Kp - K), (0, Np - N))) if (Kp, Np) != (K, N) else w
    out = pl.pallas_call(
        _matmul_kernel,
        out_shape=jax.ShapeDtypeStruct((Mp, Np), out_dtype),
        grid=(Mp // tm, Np // tn, Kp // tk),
        in_specs=[pl.BlockSpec((tm, tk), lambda i, j, k: (i, k)),
                  pl.BlockSpec((tk, tn), lambda i, j, k: (k, j))],
        out_specs=pl.BlockSpec((tm, tn), lambda i, j, k: (i, j)),
        scratch_shapes=[pltpu.VMEM((tm, tn), jnp.float32)],
        compiler_params=pltpu.CompilerParams(
            dimension_semantics=("parallel", "parallel", "arbitrary")),
    )(xp, wp)
    return out[:M, :N]


def pallas_up(h, lw, rot, cos_full, sin_full, eps, scale, ts):
    bs, seq, H = h.shape
    qkv = lw["wq"].shape[1]
    mlp = lw["wg"].shape[1]
    act = lambda c: pl.BlockSpec((1, ts, c), lambda b, s: (b, s, 0))
    cst = lambda shp: pl.BlockSpec(shp, lambda b, s: (0, 0))
    seqb = lambda c: pl.BlockSpec((ts, c), lambda b, s: (s, 0))
    return pl.pallas_call(
        functools.partial(_up_kernel, eps=eps, scale=scale),
        out_shape=(jax.ShapeDtypeStruct((bs, seq, qkv), jnp.bfloat16),
                   jax.ShapeDtypeStruct((bs, seq, qkv), jnp.bfloat16),
                   jax.ShapeDtypeStruct((bs, seq, qkv), jnp.bfloat16),
                   jax.ShapeDtypeStruct((bs, seq, mlp), jnp.bfloat16)),
        grid=(bs, seq // ts),
        in_specs=[act(H), cst((1, H)), cst((1, H)),
                  cst(lw["wq"].shape), cst(lw["wk"].shape), cst(lw["wv"].shape),
                  cst(lw["wg"].shape), cst(lw["wu"].shape),
                  cst(rot.shape), seqb(qkv), seqb(qkv)],
        out_specs=(act(qkv), act(qkv), act(qkv), act(mlp)),
        compiler_params=pltpu.CompilerParams(
            dimension_semantics=("parallel", "parallel")),
    )(h, lw["gamma"], lw["beta"], lw["wq"], lw["wk"], lw["wv"], lw["wg"], lw["wu"],
      rot, cos_full, sin_full)


def pallas_attention(qh, kh, vh, kvalid, kreg, vreg, nh, tq, tk):
    BH, seq, hd = qh.shape
    return pl.pallas_call(
        _flash_attn_kernel,
        out_shape=jax.ShapeDtypeStruct((BH, seq, hd), jnp.bfloat16),
        grid=(BH, seq // tq, seq // tk),
        in_specs=[
            pl.BlockSpec((1, tq, hd), lambda bh, qi, ki: (bh, qi, 0)),       # q (roped)
            pl.BlockSpec((1, tk, hd), lambda bh, qi, ki: (bh, ki, 0)),       # k (roped)
            pl.BlockSpec((1, tk, hd), lambda bh, qi, ki: (bh, ki, 0)),       # v
            pl.BlockSpec((1, 1, tk), lambda bh, qi, ki: (bh // nh, 0, ki)),  # 0/1 valid
            pl.BlockSpec((1, 1, hd), lambda bh, qi, ki: (bh % nh, 0, 0)),    # k_reg
            pl.BlockSpec((1, 1, hd), lambda bh, qi, ki: (bh % nh, 0, 0)),    # v_reg
        ],
        out_specs=pl.BlockSpec((1, tq, hd), lambda bh, qi, ki: (bh, qi, 0)),
        scratch_shapes=[pltpu.VMEM((tq, 1), jnp.float32),     # running max
                        pltpu.VMEM((tq, 1), jnp.float32),     # running denom
                        pltpu.VMEM((tq, hd), jnp.float32)],   # running accum
        compiler_params=pltpu.CompilerParams(
            dimension_semantics=("parallel", "parallel", "arbitrary")),
    )(qh, kh, vh, kvalid, kreg, vreg)


def pallas_down(h, ctx, mlp_out, wda, wdm, filt, ts):
    bs, seq, H = h.shape
    qkv = ctx.shape[-1]
    mlp = mlp_out.shape[-1]
    return pl.pallas_call(
        _down_kernel,
        out_shape=jax.ShapeDtypeStruct((bs, seq, H), jnp.float32),
        grid=(bs, seq // ts),
        in_specs=[pl.BlockSpec((1, ts, H), lambda b, s: (b, s, 0)),
                  pl.BlockSpec((1, ts, qkv), lambda b, s: (b, s, 0)),
                  pl.BlockSpec((1, ts, mlp), lambda b, s: (b, s, 0)),
                  pl.BlockSpec(wda.shape, lambda b, s: (0, 0)),
                  pl.BlockSpec(wdm.shape, lambda b, s: (0, 0)),
                  pl.BlockSpec((1, H), lambda b, s: (0, 0))],
        out_specs=pl.BlockSpec((1, ts, H), lambda b, s: (b, s, 0)),
        compiler_params=pltpu.CompilerParams(
            dimension_semantics=("parallel", "parallel")),
    )(h, ctx, mlp_out, wda, wdm, filt)


def pallas_lm_head(x_flat, gamma, beta, w, eps, tr=256, tv=2048):
    """Vocab-tiled LM head: streaming logsumexp pass + normalize pass."""
    M, H = x_flat.shape
    V = w.shape[1]
    tr = min(tr, _round_up(M, 8))
    Mp = _round_up(M, tr)
    xp = jnp.pad(x_flat, ((0, Mp - M), (0, 0))) if Mp != M else x_flat
    tv = _pick_tile(V, tv)
    grid = (Mp // tr, V // tv)
    row = pl.BlockSpec((tr, H), lambda r, vb: (r, 0))
    gb = pl.BlockSpec((1, H), lambda r, vb: (0, 0))
    wsp = pl.BlockSpec((H, tv), lambda r, vb: (0, vb))
    lse_sp = pl.BlockSpec((tr, 1), lambda r, vb: (r, 0))

    lse = pl.pallas_call(
        functools.partial(_lm_lse_kernel, eps=eps),
        out_shape=jax.ShapeDtypeStruct((Mp, 1), jnp.float32),
        grid=grid,
        in_specs=[row, gb, gb, wsp],
        out_specs=lse_sp,
        scratch_shapes=[pltpu.VMEM((tr, 1), jnp.float32),
                        pltpu.VMEM((tr, 1), jnp.float32)],
        compiler_params=pltpu.CompilerParams(
            dimension_semantics=("parallel", "arbitrary")),
    )(xp, gamma, beta, w)

    out = pl.pallas_call(
        functools.partial(_lm_norm_kernel, eps=eps),
        out_shape=jax.ShapeDtypeStruct((Mp, V), jnp.float32),
        grid=grid,
        in_specs=[row, gb, gb, wsp, lse_sp],
        out_specs=pl.BlockSpec((tr, tv), lambda r, vb: (r, vb)),
        compiler_params=pltpu.CompilerParams(
            dimension_semantics=("parallel", "parallel")),
    )(xp, gamma, beta, w, lse)
    return out[:M]


# ----------------------------------------------------------------------------
# one-time parameter preparation (casts / splits / RoPE tables, NOT per call)
# ----------------------------------------------------------------------------
def prepare_params(params, cfg):
    nh, hd, mlp = cfg["nh"], cfg["hd"], cfg["mlp"]
    qkv = nh * hd
    cos, sin = params["cos"], params["sin"]                   # (seq, hd) f32
    # Block-diagonal rotate-half matrix over the packed (nh*hd) head layout.
    rot = jnp.kron(jnp.eye(nh, dtype=jnp.float32), _rotate_half_matrix(hd))
    prep = dict(
        w_zproj=params["w_zproj"].astype(jnp.bfloat16),
        rot=rot.astype(jnp.bfloat16),
        cos_full=jnp.tile(cos, (1, nh)).astype(jnp.float32),  # (seq, qkv)
        sin_full=jnp.tile(sin, (1, nh)).astype(jnp.float32),
        lm_gamma=params["lm_gamma"].reshape(1, -1).astype(jnp.float32),
        lm_beta=params["lm_beta"].reshape(1, -1).astype(jnp.float32),
        w_lm=params["w_lm"].astype(jnp.bfloat16),
        layers=[],
    )
    for lp in params["layers"]:
        w_up = lp["w_up"].astype(jnp.bfloat16)
        w_down = lp["w_down"].astype(jnp.bfloat16)
        prep["layers"].append(dict(
            gamma=lp["gamma"].reshape(1, -1).astype(jnp.float32),
            beta=lp["beta"].reshape(1, -1).astype(jnp.float32),
            filt=lp["filt"].reshape(1, -1).astype(jnp.float32),
            wq=w_up[:, :qkv],
            wk=w_up[:, qkv:2 * qkv],
            wv=w_up[:, 2 * qkv:3 * qkv],
            wg=w_up[:, 3 * qkv:3 * qkv + mlp],
            wu=w_up[:, 3 * qkv + mlp:],
            wda=w_down[:qkv],
            wdm=w_down[qkv:],
            k_reg=lp["k_reg"].reshape(nh, 1, hd).astype(jnp.bfloat16),
            v_reg=lp["v_reg"].reshape(nh, 1, hd).astype(jnp.float32),
        ))
    return prep


def pallas_forward(mask, z_out, prep, cfg):
    """HLmDecoder.forward(mask, z_out) -> log_softmax logits, via Pallas kernels."""
    bs, seq = mask.shape
    nh, hd, eps = cfg["nh"], cfg["hd"], cfg["eps"]
    qkv = nh * hd
    H = prep["w_zproj"].shape[1]
    zout = z_out.shape[-1]

    # z_proj (tiled bf16 matmul, f32 residual stream)
    h = pallas_matmul(z_out.reshape(bs * seq, zout).astype(jnp.bfloat16),
                      prep["w_zproj"]).reshape(bs, seq, H)

    # 0/1 key-validity row (the always-valid register column is handled
    # inside the attention epilogue).
    kvalid = mask.astype(jnp.float32)[:, None, :]             # (bs, 1, seq)

    scale = 1.0 / math.sqrt(hd)
    ts = _pick_tile(seq, 256)      # row tile for up/down projections
    tq = _pick_tile(seq, 512)      # query tile (large -> fewer K/V re-fetches)
    tk = _pick_tile(seq, 512)      # key tile

    for lp in prep["layers"]:
        q, k, v, mlp_out = pallas_up(h, lp, prep["rot"], prep["cos_full"],
                                     prep["sin_full"], eps, scale, ts)

        def to_heads(t):   # (bs, seq, nh*hd) -> (bs*nh, seq, hd), XLA-level layout
            return (t.reshape(bs, seq, nh, hd)
                     .transpose(0, 2, 1, 3)
                     .reshape(bs * nh, seq, hd))

        ctx = pallas_attention(to_heads(q), to_heads(k), to_heads(v), kvalid,
                               lp["k_reg"], lp["v_reg"], nh, tq, tk)
        ctx = (ctx.reshape(bs, nh, seq, hd)
                  .transpose(0, 2, 1, 3)
                  .reshape(bs, seq, qkv))

        h = pallas_down(h, ctx, mlp_out, lp["wda"], lp["wdm"], lp["filt"], ts)

    logp = pallas_lm_head(h.reshape(bs * seq, H), prep["lm_gamma"],
                          prep["lm_beta"], prep["w_lm"], eps)
    return logp.reshape(bs, seq, -1)


# ----------------------------------------------------------------------------
# Pure-JAX reference (mirrors the PyTorch forward) for validation
# ----------------------------------------------------------------------------
def reference_forward(mask, z_out, params, cfg):
    P = jax.lax.Precision.HIGHEST
    bs, seq = mask.shape
    nh, hd, mlp, eps = cfg["nh"], cfg["hd"], cfg["mlp"], cfg["eps"]
    qkv = nh * hd
    cos, sin = params["cos"], params["sin"]

    h = jnp.dot(z_out, params["w_zproj"], precision=P)
    key_bias = jnp.where(mask, 0.0, -1e30).astype(jnp.float32)
    key_bias = jnp.concatenate([key_bias, jnp.zeros((bs, 1), jnp.float32)], axis=-1)

    for lp in params["layers"]:
        xn = _layernorm(h, lp["gamma"], lp["beta"], eps)
        u = jnp.dot(xn, lp["w_up"], precision=P)
        q, k, v, gate, val = jnp.split(u, [qkv, 2 * qkv, 3 * qkv, 3 * qkv + mlp], axis=-1)

        def to_heads(t):
            return t.reshape(bs, seq, nh, hd)

        def rope(t):
            t1, t2 = t[..., :hd // 2], t[..., hd // 2:]
            rot = jnp.concatenate([-t2, t1], axis=-1)
            return t * cos[None, :, None, :] + rot * sin[None, :, None, :]

        qh, kh, vh = rope(to_heads(q)), rope(to_heads(k)), to_heads(v)
        kreg = jnp.broadcast_to(lp["k_reg"][None, None], (bs, 1, nh, hd))
        vreg = jnp.broadcast_to(lp["v_reg"][None, None], (bs, 1, nh, hd))
        kh = jnp.concatenate([kh, kreg], axis=1)
        vh = jnp.concatenate([vh, vreg], axis=1)

        s = jnp.einsum("bqhd,bkhd->bhqk", qh, kh, precision=P) / jnp.sqrt(jnp.float32(hd))
        s = s + key_bias[:, None, None, :]
        p = jax.nn.softmax(s, axis=-1)
        attn = jnp.einsum("bhqk,bkhd->bqhd", p, vh, precision=P).reshape(bs, seq, qkv)

        mlp_out = jax.nn.silu(gate) * val
        d = jnp.dot(jnp.concatenate([attn, mlp_out], axis=-1), lp["w_down"], precision=P)
        h = h + lp["filt"] * d

    xn = _layernorm(h, params["lm_gamma"], params["lm_beta"], eps)
    logits = jnp.dot(xn, params["w_lm"], precision=P)
    return jax.nn.log_softmax(logits, axis=-1)


# ----------------------------------------------------------------------------
# main
# ----------------------------------------------------------------------------
if __name__ == "__main__":
    # Small synthetic HLmConfig
    B, SEQ, H = 2, 8, 32
    NH, HD = 4, 16               # num_attention_heads, attention_head_size
    MLP = 64
    ZSIZE, ZLAYERS = 8, 2        # z_size, z_output_layers -> z_output_size = 16
    VOCAB = 64
    EPS = 1e-5
    ROPE_BASE = 10000.0
    NUM_LAYERS = 2
    QKV = NH * HD
    ZOUT = ZSIZE * ZLAYERS
    cfg = dict(nh=NH, hd=HD, mlp=MLP, eps=EPS)

    key = jax.random.PRNGKey(0)
    ks = jax.random.split(key, 8)

    def w(k, shape, scale=0.05):
        return (scale * jax.random.normal(k, shape)).astype(jnp.float32)

    # RoPE tables (rope_fraction=1 -> full head dim, position_scale=1.0)
    half = HD // 2
    inv_freq = 1.0 / (ROPE_BASE ** (jnp.arange(half, dtype=jnp.float32) / half))
    ang = jnp.arange(SEQ, dtype=jnp.float32)[:, None] * inv_freq[None, :]
    cos = jnp.concatenate([jnp.cos(ang), jnp.cos(ang)], axis=-1)
    sin = jnp.concatenate([jnp.sin(ang), jnp.sin(ang)], axis=-1)

    layer_params = []
    lk = jax.random.split(ks[0], NUM_LAYERS)
    for i in range(NUM_LAYERS):
        sk = jax.random.split(lk[i], 4)
        layer_params.append(dict(
            gamma=jnp.ones((H,), jnp.float32),
            beta=jnp.zeros((H,), jnp.float32),
            filt=0.1 * jnp.ones((H,), jnp.float32),   # ReZero exit scale (nonzero test)
            w_up=w(sk[0], (H, 3 * QKV + 2 * MLP)),
            w_down=w(sk[1], (QKV + MLP, H)),
            k_reg=w(sk[2], (NH, HD), 0.2),
            v_reg=w(sk[3], (NH, HD), 0.2),
        ))

    params = dict(
        w_zproj=w(ks[1], (ZOUT, H)),
        cos=cos, sin=sin,
        layers=layer_params,
        lm_gamma=jnp.ones((H,), jnp.float32),
        lm_beta=jnp.zeros((H,), jnp.float32),
        w_lm=w(ks[2], (H, VOCAB)),
    )

    z_out = jax.random.normal(ks[3], (B, SEQ, ZOUT), jnp.float32)
    lengths = jnp.array([SEQ, SEQ - 3])
    mask = jnp.arange(SEQ)[None, :] < lengths[:, None]   # (B, SEQ) bool padding mask

    prep = prepare_params(params, cfg)
    out = jax.block_until_ready(pallas_forward(mask, z_out, prep, cfg))
    ref = reference_forward(mask, z_out, params, cfg)

    assert out.shape == (B, SEQ, VOCAB), out.shape
    max_err = float(jnp.max(jnp.abs(out - ref)))
    if not (max_err < 5e-2):
        raise SystemExit(f"mismatch vs reference: max_err={max_err}")
    print("KERNEL_OK")
</pallas_src>

<mosaic_0001>
module attributes {stable_mosaic.version = 11 : i64} {
  func.func @_matmul_kernel(%arg0: i32, %arg1: i32, %arg2: i32, %arg3: memref<16x16xbf16, #tpu.memory_space<vmem>>, %arg4: memref<16x32xbf16, #tpu.memory_space<vmem>>, %arg5: memref<16x32xf32, #tpu.memory_space<vmem>>, %arg6: memref<16x32xf32, #tpu.memory_space<vmem>>) attributes {dimension_semantics = [#tpu.dimension_semantics<parallel>, #tpu.dimension_semantics<parallel>, #tpu.dimension_semantics<arbitrary>], iteration_bounds = array<i64: 1, 1, 1>, scalar_prefetch = 0 : i64, scratch_operands = 1 : i64, tpu.core_type = #tpu.core_type<tc>, window_params = [{transform_indices = @transform_0, window_bounds = array<i64: 16, 16>}, {transform_indices = @transform_1, window_bounds = array<i64: 16, 32>}, {transform_indices = @transform_2, window_bounds = array<i64: 16, 32>}]} {
    %c0_i32 = arith.constant 0 : i32
    %0 = arith.cmpi eq, %arg2, %c0_i32 : i32
    %1 = arith.extui %0 : i1 to i32
    %c0_i32_0 = arith.constant 0 : i32
    %2 = arith.cmpi ne, %1, %c0_i32_0 : i32
    scf.if %2 {
      %cst_10 = arith.constant 0.000000e+00 : f32
      %12 = vector.broadcast %cst_10 : f32 to vector<16x32xf32>
      %c0_11 = arith.constant 0 : index
      %c0_12 = arith.constant 0 : index
      %13 = vector.load %arg6[%c0_11, %c0_12] : memref<16x32xf32, #tpu.memory_space<vmem>>, vector<16x32xf32>
      tpu.vector_store %arg6[%c0_11, %c0_12], %12 {strides = array<i32>} : memref<16x32xf32, #tpu.memory_space<vmem>>, vector<16x32xf32>,
    } else {
    }
    %c0 = arith.constant 0 : index
    %c0_1 = arith.constant 0 : index
    %3 = vector.load %arg6[%c0, %c0_1] : memref<16x32xf32, #tpu.memory_space<vmem>>, vector<16x32xf32>
    %c0_2 = arith.constant 0 : index
    %c0_3 = arith.constant 0 : index
    %4 = vector.load %arg3[%c0_2, %c0_3] : memref<16x16xbf16, #tpu.memory_space<vmem>>, vector<16x16xbf16>
    %c0_4 = arith.constant 0 : index
    %c0_5 = arith.constant 0 : index
    %5 = vector.load %arg4[%c0_4, %c0_5] : memref<16x32xbf16, #tpu.memory_space<vmem>>, vector<16x32xbf16>
    %cst = arith.constant dense<0.000000e+00> : vector<16x32xf32>
    %6 = tpu.matmul %4, %5, %cst {dimension_numbers = #tpu.dot_dimension_numbers<[1], [0], [0], [1], [0, 0, 1, 1], [], []>} : vector<16x16xbf16>, vector<16x32xbf16>, vector<16x32xf32> -> vector<16x32xf32>
    %7 = arith.addf %3, %6 : vector<16x32xf32>
    %c0_6 = arith.constant 0 : index
    %c0_7 = arith.constant 0 : index
    %8 = vector.load %arg6[%c0_6, %c0_7] : memref<16x32xf32, #tpu.memory_space<vmem>>, vector<16x32xf32>
    tpu.vector_store %arg6[%c0_6, %c0_7], %7 {strides = array<i32>} : memref<16x32xf32, #tpu.memory_space<vmem>>, vector<16x32xf32>,
    %c0_i32_8 = arith.constant 0 : i32
    %9 = arith.cmpi eq, %arg2, %c0_i32_8 : i32
    %10 = arith.extui %9 : i1 to i32
    %c0_i32_9 = arith.constant 0 : i32
    %11 = arith.cmpi ne, %10, %c0_i32_9 : i32
    scf.if %11 {
      %c0_10 = arith.constant 0 : index
      %c0_11 = arith.constant 0 : index
      %12 = vector.load %arg6[%c0_10, %c0_11] : memref<16x32xf32, #tpu.memory_space<vmem>>, vector<16x32xf32>
      %c0_12 = arith.constant 0 : index
      %c0_13 = arith.constant 0 : index
      %13 = vector.load %arg5[%c0_12, %c0_13] : memref<16x32xf32, #tpu.memory_space<vmem>>, vector<16x32xf32>
      tpu.vector_store %arg5[%c0_12, %c0_13], %12 {strides = array<i32>} : memref<16x32xf32, #tpu.memory_space<vmem>>, vector<16x32xf32>,
    } else {
    }
    return
  }
  func.func @transform_0(%arg0: i32, %arg1: i32, %arg2: i32) -> (i32, i32) {
    %c0_i32 = arith.constant 0 : i32
    return %arg0, %arg2 : i32, i32
  }
  func.func @transform_1(%arg0: i32, %arg1: i32, %arg2: i32) -> (i32, i32) {
    %c0_i32 = arith.constant 0 : i32
    return %arg2, %arg1 : i32, i32
  }
  func.func @transform_2(%arg0: i32, %arg1: i32, %arg2: i32) -> (i32, i32) {
    %c0_i32 = arith.constant 0 : i32
    return %arg0, %arg1 : i32, i32
  }
}

</mosaic_0001>

<llo_original>
// kernel: tpu_custom_call.1
$region0: #{tpu_custom_call.1}
  #allocation0 [shape = 'u32[]', space=smem, size = 0x4, offset = 0x4, fixed_abs, tag = 'smem constant byte address 0x4 - core index']
  #allocation1 [shape = 'u32[72,128]{1,0:T(1,128)}', space=vmem, size = 0x9000, scoped, tag = 'internal scratch']
  #allocation2 [shape = 'f32[16,32]{1,0:T(8,128)}', space=vmem, size = 0x2000, scoped, tag = 'scratch operand']
  %s0 = inlined_call_operand.hbm [shape: bf16[16,16], index: 0, kind: input, shape index: {}]
  %s1 = inlined_call_operand.hbm [shape: bf16[16,32], index: 1, kind: input, shape index: {}]
  %s2 = inlined_call_operand.hbm [shape: f32[16,32], index: 2, kind: output, shape index: {}]
  %s3 = sld [smem:[#allocation0]]
  $region34: #{tpu_custom_call.1} parent=0
    _
  %s5 = ssub.s32 1, %s3
  %s6 = scalar_select 0, %s5, %s3
  $region1: #{tpu_custom_call.1} parent=0
    #allocation3 [shape = 'u8[4096]{0}', space=vmem, size = 0x1000, scoped, tag = 'input window, operand 0, single buffered']
    #allocation4 [shape = 's32[1]{0}', space=sflag, size = 0x4, scoped, tag = 'scoped memory for tpu_custom_call.1']
    #allocation5 [shape = 's32[1]{0}', space=sflag, size = 0x4, scoped, tag = 'scoped memory for tpu_custom_call.1']
    #allocation6 [shape = 'u8[4096]{0}', space=vmem, size = 0x1000, scoped, tag = 'input window, operand 1, single buffered']
    #allocation7 [shape = 's32[1]{0}', space=sflag, size = 0x4, scoped, tag = 'scoped memory for tpu_custom_call.1']
    #allocation8 [shape = 'u8[8192]{0}', space=vmem, size = 0x2000, scoped, tag = 'output window, operand 0, single buffered']
    %7 = vsyncpa [#allocation4], 0
    %8 = vsyncpa [#allocation7], 0
    %9 = vsyncpa [#allocation5], 0
    // Predicated region
    $region2: #{tpu_custom_call.1} parent=1 // pred_check
      _
    $region3: #{tpu_custom_call.1} parent=1 // pred_check_branch
      %11 = sbr.rel (0) target = $region5
    $region4: #{tpu_custom_call.1} parent=1 // pred_region
      %13 = vsyncadd [#allocation4], 0
      %s14 = sshll.u32 %s0, 4
      %s15 = int_to_ptr.hbm [resolvable:$true] %s14
      %s16 = sshll.u32 [#allocation3], 4
      %s17 = int_to_ptr.vmem [resolvable:$true] %s16
      %22 = dma.hbm_to_vmem [thread:$0]  %s15, 128, %s17, [#allocation4], 64, 64, 4
    $region5: #{tpu_custom_call.1} parent=1 // pred_fallthru
      _
    // Predicated region
    $region6: #{tpu_custom_call.1} parent=1 // pred_check
      _
    $region7: #{tpu_custom_call.1} parent=1 // pred_check_branch
      %24 = sbr.rel (0) target = $region9
    $region8: #{tpu_custom_call.1} parent=1 // pred_region
      %26 = vsyncadd [#allocation7], 0
      %s27 = sshll.u32 %s1, 4
      %s28 = int_to_ptr.hbm [resolvable:$true] %s27
      %s29 = sshll.u32 [#allocation6], 4
      %s30 = int_to_ptr.vmem [resolvable:$true] %s29
      %35 = dma.hbm_to_vmem [thread:$0]  %s28, 128, %s30, [#allocation7], 64, 64, 4
    $region9: #{tpu_custom_call.1} parent=1 // pred_fallthru
      _
    // Predicated region
    $region10: #{tpu_custom_call.1} parent=1 // pred_check
      _
    $region11: #{tpu_custom_call.1} parent=1 // pred_check_branch
      %37 = sbr.rel (0) target = $region13
    $region12: #{tpu_custom_call.1} parent=1 // pred_region
      %39 = dma.done [#allocation4], 128
    $region13: #{tpu_custom_call.1} parent=1 // pred_fallthru
      _
    // Predicated region
    $region14: #{tpu_custom_call.1} parent=1 // pred_check
      _
    $region15: #{tpu_custom_call.1} parent=1 // pred_check_branch
      %41 = sbr.rel (0) target = $region17
    $region16: #{tpu_custom_call.1} parent=1 // pred_region
      %43 = dma.done [#allocation7], 128
    $region17: #{tpu_custom_call.1} parent=1 // pred_fallthru
      _
    %p45 = scmp.eq.s32.totalorder 0, 0
    // Predicated region
    $region18: #{tpu_custom_call.1} parent=1 // pred_check
      %p46 = pneg %p45
    $region19: #{tpu_custom_call.1} parent=1 // pred_check_branch
      %48 = sbr.rel (%p46) target = $region21
    $region20: #{tpu_custom_call.1} parent=1 // pred_region
      %vm49 = vcmask 261120
      %50 = vst.msk [vmem:[#allocation2] sm:$0xff] %vm49, 0.0
      %51 = vst.msk [vmem:[#allocation2 + $0x8] sm:$0xff] %vm49, 0.0
    $region21: #{tpu_custom_call.1} parent=1 // pred_fallthru
      _
    %v52 = vld [vmem:[#allocation2] sm:$0xff]
    %v53 = vld [vmem:[#allocation2 + $0x8] sm:$0xff]
    %v54 = vld [vmem:[#allocation3] sm:$0xf]
    %v55 = vld [vmem:[#allocation3 + $0x4] sm:$0xf]
    %v56 = vld [vmem:[#allocation6] sm:$0xf]
    %v57 = vld [vmem:[#allocation6 + $0x4] sm:$0xf]
    %v60 = vunpack.c.l.b16 %v54
    %v61 = vunpack.c.l.b16 %v55
    %v62 = vpack.c.b16 %v61, %v60
    %v65 = vunpack.c.l.b16 %v56
    %v66 = vunpack.c.l.b16 %v57
    %v67 = vpack.c.b16 %v66, %v65
    %vm69 = vcmask 130048
    %v71 = vsel %vm69, %v62, 0
    %73 = vmatpush.bf16.msra.mxu0 0
    %74 = vmatpush.bf16.msra.mxu0 0
    %75 = vmatpush.bf16.msra.mxu0 0
    %76 = vmatpush.bf16.msra.mxu0 0
    %77 = vmatpush.bf16.msra.mxu0 0
    %78 = vmatpush.bf16.msra.mxu0 0
    %79 = vmatpush.bf16.msra.mxu0 0
    %80 = vmatpush.bf16.msra.mxu0 %v67
    %81 = vmatmul.bf16.gmra.mxu0 %v71
    %v82 = vpop.f32.mrf.mxu0
    %v83 = vadd.f32 0.0, %v82
    %v84 = vpop.f32.mrf.mxu0
    %v85 = vadd.f32 0.0, %v84
    %86 = vdwg.mxu0
    %v87 = vadd.f32 %v52, %v83
    %v88 = vadd.f32 %v53, %v85
    %vm89 = vcmask 261120
    %90 = vst.msk [vmem:[#allocation2] sm:$0xff] %vm89, %v87
    %91 = vst.msk [vmem:[#allocation2 + $0x8] sm:$0xff] %vm89, %v88
    // Predicated region
    $region22: #{tpu_custom_call.1} parent=1 // pred_check
      %p92 = pneg %p45
    $region23: #{tpu_custom_call.1} parent=1 // pred_check_branch
      %94 = sbr.rel (%p92) target = $region25
    $region24: #{tpu_custom_call.1} parent=1 // pred_region
      %v95 = vld [vmem:[#allocation2] sm:$0xff]
      %v96 = vld [vmem:[#allocation2 + $0x8] sm:$0xff]
      %97 = vst.msk [vmem:[#allocation8] sm:$0xff] %vm89, %v95
      %98 = vst.msk [vmem:[#allocation8 + $0x8] sm:$0xff] %vm89, %v96
    $region25: #{tpu_custom_call.1} parent=1 // pred_fallthru
      _
    // Predicated region
    $region26: #{tpu_custom_call.1} parent=1 // pred_check
      _
    $region27: #{tpu_custom_call.1} parent=1 // pred_check_branch
      %100 = sbr.rel (0) target = $region29
    $region28: #{tpu_custom_call.1} parent=1 // pred_region
      %102 = vsyncadd [#allocation5], 0
      %s103 = sshll.u32 [#allocation8], 4
      %s104 = int_to_ptr.vmem [resolvable:$true] %s103
      %s105 = sshll.u32 %s2, 4
      %s106 = int_to_ptr.hbm [resolvable:$true] %s105
      %111 = dma.vmem_to_hbm [thread:$0]  %s104, 256, %s106, [#allocation5], 128, 128, 8
    $region29: #{tpu_custom_call.1} parent=1 // pred_fallthru
      _
    // Predicated region
    $region30: #{tpu_custom_call.1} parent=1 // pred_check
      _
    $region31: #{tpu_custom_call.1} parent=1 // pred_check_branch
      %113 = sbr.rel (0) target = $region33
    $region32: #{tpu_custom_call.1} parent=1 // pred_region
      %115 = dma.done [#allocation5], 256
    $region33: #{tpu_custom_call.1} parent=1 // pred_fallthru
      _
    %116 = vsyncpa [#allocation4], 1
    %117 = vsyncpa [#allocation7], 1
    %118 = vsyncpa [#allocation5], 1

</llo_original>
